<compile_context>
chip_gen: v7x
topology: tpu7x:2x2x1
jax: 0.10.0
libtpu: 0.0.40
codegen_flags: <defaults>
</compile_context>

<pallas_src>
import math
import jax
import jax.numpy as jnp
from jax.experimental import pallas as pl
from jax.experimental.pallas import tpu as pltpu


def _round_up(x, m):
    return ((x + m - 1) // m) * m


def _cdiv(a, b):
    return (a + b - 1) // b


def _gelu_exact(x):
    # nn.GELU() default is the exact (erf) variant; evaluated in f32.
    return 0.5 * x * (1.0 + jax.lax.erf(x * (1.0 / math.sqrt(2.0))))


def _gelu_tanh(x):
    # Optional tanh approximation: routes the transcendental to the EUP slot
    # (useful on v5e where exact erf is a long VPU polynomial).
    return jax.nn.gelu(x, approximate=True)


def _vmem_capacity_bytes():
    try:
        return int(pltpu.get_tpu_info().vmem_capacity_bytes)
    except Exception:
        return 64 << 20  # conservative default (v7x per-TensorCore)


# ---------------------------------------------------------------------------
# Kernel A (flat path): weights fully resident in VMEM, 1-D grid over token
# tiles.  fc1/GELU/fc2 are interleaved over H chunks so the MXU does not idle
# during the erf-GELU phase.
# ---------------------------------------------------------------------------
def _make_flat_kernel(hc, n_chunks, gelu_fn):
    def kernel(x_ref, w1_ref, w2_ref, o_ref):
        x = x_ref[...]                       # (tm, D_in), native dtype -> MXU
        acc = None                           # f32 accumulator for fc2
        # Statically unrolled H-chunk loop: static slices are free views, and
        # the LLO scheduler overlaps chunk-k GELU (VPU/EUP) with chunk-(k±1)
        # matmuls (MXU).
        for c in range(n_chunks):
            w1c = w1_ref[:, c * hc:(c + 1) * hc]
            h = jnp.dot(x, w1c, preferred_element_type=jnp.float32)
            h = gelu_fn(h).astype(w2_ref.dtype)      # activation + cast fused
            part = jnp.dot(h, w2_ref[c * hc:(c + 1) * hc, :],
                           preferred_element_type=jnp.float32)
            acc = part if acc is None else acc + part
        # drop1 / drop2: p=0.0 -> identity (module default)
        o_ref[...] = acc.astype(o_ref.dtype)
    return kernel


# ---------------------------------------------------------------------------
# Kernel B (fallback): hidden (H) dim tiled as a reduction grid axis with an
# f32 accumulator.  Only used when even single-buffered weights do not fit in
# VMEM.  GELU is elementwise over H, so H-tiling is exact.
# ---------------------------------------------------------------------------
def _make_htiled_kernel(gelu_fn):
    def kernel(x_ref, w1_ref, w2_ref, o_ref, acc_ref):
        k = pl.program_id(1)

        @pl.when(k == 0)
        def _():
            acc_ref[...] = jnp.zeros_like(acc_ref)

        h = jnp.dot(x_ref[...], w1_ref[...], preferred_element_type=jnp.float32)
        h = gelu_fn(h).astype(w2_ref.dtype)
        acc_ref[...] += jnp.dot(h, w2_ref[...], preferred_element_type=jnp.float32)

        @pl.when(k == pl.num_programs(1) - 1)
        def _():
            o_ref[...] = acc_ref[...].astype(o_ref.dtype)
    return kernel


def vmlp_pallas(x, w1, w2, *, tm=512, hc=512, th=None, approximate_gelu=False):
    """Fused ViT MLP:  y = gelu(x @ w1) @ w2   (bias=False, drop=0.0).

    x : (B, N, D_in) tokens (channels-last);  w1: (D_in, H);  w2: (H, D_out).
    tm: token tile (512 default; shrunk automatically for small M).
    hc: in-kernel H chunk for the flat path (multiple of 128 preferred).
    th: optional hidden tile (multiple of 128 dividing H) forcing the H-tiled
        reduction fallback.
    Note: for peak MXU throughput (esp. v5e, which has no native f32 MXU path)
    pass bf16 x/w1/w2; accumulation is f32 via preferred_element_type.  Keep
    D_out a multiple of 128 for lane-dense (unmasked) output stores.
    """
    B, N, D_in = x.shape
    Hdim = w1.shape[1]
    D_out = w2.shape[1]
    assert w1.shape[0] == D_in and w2.shape[0] == Hdim

    gelu_fn = _gelu_tanh if approximate_gelu else _gelu_exact

    M = B * N
    x2d = x.reshape(M, D_in)

    # Token tile: sublane-minimum aware, no whole-array padding.  The ragged
    # last tile (if any) is masked by Pallas on load/store; garbage rows only
    # produce garbage rows in the (row-independent) output, which are masked.
    sub_min = {4: 8, 2: 16, 1: 32}.get(x.dtype.itemsize, 8)
    tm_eff = max(sub_min, min(tm, _round_up(M, sub_min)))
    if _cdiv(M, tm_eff) == 1 and M >= 256:
        # Give v7x's two TensorCores at least two token tiles to shard over.
        tm_eff = max(sub_min, _round_up(_cdiv(M, 2), sub_min))
    n_tok_tiles = _cdiv(M, tm_eff)

    xb, w1b, w2b, ob = (x2d.dtype.itemsize, w1.dtype.itemsize,
                        w2.dtype.itemsize, x.dtype.itemsize)

    # Generation-aware VMEM cap (leave ~15% headroom for Mosaic scratch):
    # v5e/v6e -> ~108 MiB, v7x -> ~54 MiB.
    cap = int(_vmem_capacity_bytes() * 0.85)

    # In-kernel H chunk (elementwise GELU => exact regardless of chunking).
    hc_eff = Hdim
    if Hdim > hc:
        for cand in (hc, 512, 384, 256, 128):
            if 0 < cand <= Hdim and Hdim % cand == 0 and cand % 128 == 0:
                hc_eff = cand
                break
    n_chunks = Hdim // hc_eff

    weights_bytes = D_in * Hdim * w1b + Hdim * D_out * w2b
    act_bytes = (2 * tm_eff * D_in * xb          # x tile, double-buffered
                 + 2 * tm_eff * D_out * ob       # out tile, double-buffered
                 + tm_eff * hc_eff * (4 + w2b)   # f32 GELU chunk + cast copy
                 + tm_eff * D_out * 4)           # f32 fc2 accumulator
    flat_1buf = weights_bytes + act_bytes        # weights single-buffered
    flat_2buf = 2 * weights_bytes + act_bytes    # weights double-buffered

    # Hidden tile for the (last-resort) H-tiled reduction fallback.
    if th is not None:
        if th % 128 != 0 or th > Hdim or Hdim % th != 0:
            raise ValueError(
                f"th={th} must be a multiple of 128 that divides H={Hdim}")
        th_eff = th
    else:
        th_eff = None
        for cand in (2048, 1024, 512, 256, 128):
            if cand <= Hdim and Hdim % cand == 0:
                th_eff = cand
                break

    def _limit(step_bytes):
        want = step_bytes + step_bytes // 4 + (2 << 20)
        return int(max(min(want, cap), min(32 << 20, cap)))

    def run_flat(weight_pipeline_mode, step_bytes):
        wkw = ({} if weight_pipeline_mode is None
               else dict(pipeline_mode=weight_pipeline_mode))
        return pl.pallas_call(
            _make_flat_kernel(hc_eff, n_chunks, gelu_fn),
            out_shape=jax.ShapeDtypeStruct((M, D_out), x.dtype),
            grid_spec=pltpu.PrefetchScalarGridSpec(
                num_scalar_prefetch=0,
                grid=(n_tok_tiles,),
                in_specs=[
                    pl.BlockSpec((tm_eff, D_in), lambda i: (i, 0)),
                    # constant index_map -> DMA'd from HBM exactly once
                    pl.BlockSpec((D_in, Hdim), lambda i: (0, 0), **wkw),
                    pl.BlockSpec((Hdim, D_out), lambda i: (0, 0), **wkw),
                ],
                out_specs=pl.BlockSpec((tm_eff, D_out), lambda i: (i, 0)),
            ),
            compiler_params=pltpu.CompilerParams(
                dimension_semantics=("parallel",),
                vmem_limit_bytes=_limit(step_bytes),
            ),
        )(x2d, w1, w2)

    def run_htiled():
        step_bytes = (2 * (D_in * th_eff * w1b + th_eff * D_out * w2b)
                      + 2 * tm_eff * D_in * xb
                      + 2 * tm_eff * D_out * ob
                      + tm_eff * D_out * 4
                      + tm_eff * th_eff * (4 + w2b))
        return pl.pallas_call(
            _make_htiled_kernel(gelu_fn),
            out_shape=jax.ShapeDtypeStruct((M, D_out), x.dtype),
            grid_spec=pltpu.PrefetchScalarGridSpec(
                num_scalar_prefetch=0,
                grid=(n_tok_tiles, Hdim // th_eff),
                in_specs=[
                    pl.BlockSpec((tm_eff, D_in), lambda i, k: (i, 0)),
                    pl.BlockSpec((D_in, th_eff), lambda i, k: (0, k)),
                    pl.BlockSpec((th_eff, D_out), lambda i, k: (k, 0)),
                ],
                out_specs=pl.BlockSpec((tm_eff, D_out), lambda i, k: (i, 0)),
                scratch_shapes=[pltpu.VMEM((tm_eff, D_out), jnp.float32)],
            ),
            compiler_params=pltpu.CompilerParams(
                # token axis shards across TensorCores; H reduction last/arbitrary
                dimension_semantics=("parallel", "arbitrary"),
                vmem_limit_bytes=_limit(step_bytes),
            ),
        )(x2d, w1, w2)

    if th is not None:
        out2d = run_htiled()
    elif flat_2buf <= cap:
        # Plenty of VMEM: default double-buffering (weights still read once).
        out2d = run_flat(None, flat_2buf)
    elif flat_1buf <= cap:
        # Weights fit only single-buffered: request pl.Buffered(1).  Fall back
        # only on the specific pipeline_mode rejection, not on real failures.
        try:
            out2d = run_flat(pl.Buffered(1), flat_1buf)
        except (TypeError, ValueError, NotImplementedError,
                pltpu.LoweringException):
            out2d = run_htiled() if th_eff is not None else run_flat(None, flat_2buf)
    else:
        # Last resort: re-streams weights once per token tile.
        out2d = run_htiled() if th_eff is not None else run_flat(None, flat_2buf)

    return out2d.reshape(B, N, D_out)


def vmlp_reference(x, w1, w2):
    h = _gelu_exact(jnp.einsum("bnd,dh->bnh", x.astype(jnp.float32),
                               w1.astype(jnp.float32)))
    y = jnp.einsum("bnh,ho->bno", h, w2.astype(jnp.float32))
    return y.astype(x.dtype)


if __name__ == "__main__":
    # Small shapes consistent with the module: batch=2, seq=8, in=out=32, hidden=64.
    B, N = 2, 8
    in_features = 32
    hidden_features = 64
    out_features = in_features  # module default: out_features or in_features

    key = jax.random.PRNGKey(0)
    kx, k1, k2, k3, k4, k5, k6, k7 = jax.random.split(key, 8)

    x = jax.random.normal(kx, (B, N, in_features), dtype=jnp.float32)
    # Deterministic synthetic weights (bias=False per module default).
    w1 = 0.02 * jax.random.normal(k1, (in_features, hidden_features), dtype=jnp.float32)
    w2 = 0.02 * jax.random.normal(k2, (hidden_features, out_features), dtype=jnp.float32)

    # 1) Flat path (weights resident in VMEM, single H chunk).
    out = jax.block_until_ready(vmlp_pallas(x, w1, w2))
    ref = vmlp_reference(x, w1, w2)
    assert out.shape == (B, N, out_features)
    assert jnp.allclose(out, ref, atol=2e-5, rtol=2e-3), "flat-path mismatch vs. reference"

    # 2) Flat path with in-kernel H-chunking (H=1024 -> 2 chunks of 512).
    d3, h3 = 64, 1024
    x3 = jax.random.normal(k3, (B, N, d3), dtype=jnp.float32)
    w1c = 0.02 * jax.random.normal(k4, (d3, h3), dtype=jnp.float32)
    w2c = 0.02 * jax.random.normal(k5, (h3, d3), dtype=jnp.float32)
    out3 = jax.block_until_ready(vmlp_pallas(x3, w1c, w2c))
    ref3 = vmlp_reference(x3, w1c, w2c)
    assert out3.shape == (B, N, d3)
    assert jnp.allclose(out3, ref3, atol=2e-5, rtol=2e-3), "chunked-flat mismatch vs. reference"

    # 3) H-tiled reduction fallback (forced via th), used when weights cannot
    #    stay resident in VMEM.
    H2 = 256
    w1b = 0.02 * jax.random.normal(k6, (in_features, H2), dtype=jnp.float32)
    w2b = 0.02 * jax.random.normal(k7, (H2, out_features), dtype=jnp.float32)
    out2 = jax.block_until_ready(vmlp_pallas(x, w1b, w2b, th=128))
    ref2 = vmlp_reference(x, w1b, w2b)
    assert out2.shape == (B, N, out_features)
    assert jnp.allclose(out2, ref2, atol=2e-5, rtol=2e-3), "H-tiled-path mismatch vs. reference"

    print("KERNEL_OK")
</pallas_src>

<mosaic_0001>
module attributes {stable_mosaic.version = 11 : i64} {
  func.func @kernel(%arg0: i32, %arg1: memref<16x32xf32, #tpu.memory_space<vmem>>, %arg2: memref<32x64xf32, #tpu.memory_space<vmem>>, %arg3: memref<64x32xf32, #tpu.memory_space<vmem>>, %arg4: memref<16x32xf32, #tpu.memory_space<vmem>>) attributes {dimension_semantics = [#tpu.dimension_semantics<parallel>], iteration_bounds = array<i64: 1>, scalar_prefetch = 0 : i64, scratch_operands = 0 : i64, tpu.core_type = #tpu.core_type<tc>, window_params = [{transform_indices = @transform_0, window_bounds = array<i64: 16, 32>}, {pipeline_mode = #tpu.pipeline_mode<synchronous>, transform_indices = @transform_1, window_bounds = array<i64: 32, 64>}, {pipeline_mode = #tpu.pipeline_mode<synchronous>, transform_indices = @transform_2, window_bounds = array<i64: 64, 32>}, {transform_indices = @transform_3, window_bounds = array<i64: 16, 32>}]} {
    %c0 = arith.constant 0 : index
    %c0_0 = arith.constant 0 : index
    %0 = vector.load %arg1[%c0, %c0_0] : memref<16x32xf32, #tpu.memory_space<vmem>>, vector<16x32xf32>
    %c0_1 = arith.constant 0 : index
    %c0_2 = arith.constant 0 : index
    %1 = vector.load %arg2[%c0_1, %c0_2] : memref<32x64xf32, #tpu.memory_space<vmem>>, vector<32x64xf32>
    %cst = arith.constant dense<0.000000e+00> : vector<16x64xf32>
    %2 = tpu.matmul %0, %1, %cst {dimension_numbers = #tpu.dot_dimension_numbers<[1], [0], [0], [1], [0, 0, 1, 1], [], []>} : vector<16x32xf32>, vector<32x64xf32>, vector<16x64xf32> -> vector<16x64xf32>
    %cst_3 = arith.constant 5.000000e-01 : f32
    %3 = vector.broadcast %cst_3 : f32 to vector<16x64xf32>
    %4 = arith.mulf %3, %2 : vector<16x64xf32>
    %cst_4 = arith.constant 0.707106769 : f32
    %5 = vector.broadcast %cst_4 : f32 to vector<16x64xf32>
    %6 = arith.mulf %2, %5 : vector<16x64xf32>
    %7 = math.erf %6 : vector<16x64xf32>
    %cst_5 = arith.constant 1.000000e+00 : f32
    %8 = vector.broadcast %cst_5 : f32 to vector<16x64xf32>
    %9 = arith.addf %8, %7 : vector<16x64xf32>
    %10 = arith.mulf %4, %9 : vector<16x64xf32>
    %c0_6 = arith.constant 0 : index
    %c0_7 = arith.constant 0 : index
    %11 = vector.load %arg3[%c0_6, %c0_7] : memref<64x32xf32, #tpu.memory_space<vmem>>, vector<64x32xf32>
    %cst_8 = arith.constant dense<0.000000e+00> : vector<16x32xf32>
    %12 = tpu.matmul %10, %11, %cst_8 {dimension_numbers = #tpu.dot_dimension_numbers<[1], [0], [0], [1], [0, 0, 1, 1], [], []>} : vector<16x64xf32>, vector<64x32xf32>, vector<16x32xf32> -> vector<16x32xf32>
    %c0_9 = arith.constant 0 : index
    %c0_10 = arith.constant 0 : index
    %13 = vector.load %arg4[%c0_9, %c0_10] : memref<16x32xf32, #tpu.memory_space<vmem>>, vector<16x32xf32>
    tpu.vector_store %arg4[%c0_9, %c0_10], %12 {strides = array<i32>} : memref<16x32xf32, #tpu.memory_space<vmem>>, vector<16x32xf32>,
    return
  }
  func.func @transform_0(%arg0: i32) -> (i32, i32) {
    %c0_i32 = arith.constant 0 : i32
    %c0_i32_0 = arith.constant 0 : i32
    return %arg0, %c0_i32 : i32, i32
  }
  func.func @transform_1(%arg0: i32) -> (i32, i32) {
    %c0_i32 = arith.constant 0 : i32
    %c0_i32_0 = arith.constant 0 : i32
    %c0_i32_1 = arith.constant 0 : i32
    return %c0_i32, %c0_i32_0 : i32, i32
  }
  func.func @transform_2(%arg0: i32) -> (i32, i32) {
    %c0_i32 = arith.constant 0 : i32
    %c0_i32_0 = arith.constant 0 : i32
    %c0_i32_1 = arith.constant 0 : i32
    return %c0_i32, %c0_i32_0 : i32, i32
  }
  func.func @transform_3(%arg0: i32) -> (i32, i32) {
    %c0_i32 = arith.constant 0 : i32
    %c0_i32_0 = arith.constant 0 : i32
    return %arg0, %c0_i32 : i32, i32
  }
}

</mosaic_0001>

<llo_original>
// kernel: tpu_custom_call.1
$region0: #{tpu_custom_call.1}
  #allocation0 [shape = 'u32[]', space=smem, size = 0x4, offset = 0x4, fixed_abs, tag = 'smem constant byte address 0x4 - core index']
  #allocation1 [shape = 'u32[144,128]{1,0:T(1,128)}', space=vmem, size = 0x12000, scoped, tag = 'internal scratch']
  %s0 = inlined_call_operand.vmem [shape: f32[16,32], index: 0, kind: input, shape index: {}]
  %s1 = inlined_call_operand.vmem [shape: f32[32,64], index: 1, kind: input, shape index: {}]
  %s2 = inlined_call_operand.vmem [shape: f32[64,32], index: 2, kind: input, shape index: {}]
  %s3 = inlined_call_operand.hbm [shape: f32[16,32], index: 3, kind: output, shape index: {}]
  %s4 = sld [smem:[#allocation0]]
  $region22: #{tpu_custom_call.1} parent=0
    _
  %s6 = ssub.s32 1, %s4
  %s7 = scalar_select 0, %s6, %s4
  $region1: #{tpu_custom_call.1} parent=0
    #allocation2 [shape = 'u8[8192]{0}', space=vmem, size = 0x2000, scoped, tag = 'output window, operand 0, single buffered']
    #allocation3 [shape = 's32[1]{0}', space=sflag, size = 0x4, scoped, tag = 'scoped memory for tpu_custom_call.1']
    %8 = vsyncpa [#allocation3], 0
    // Predicated region
    $region2: #{tpu_custom_call.1} parent=1 // pred_check
      _
    $region3: #{tpu_custom_call.1} parent=1 // pred_check_branch
      %10 = sbr.rel (0) target = $region5
    $region4: #{tpu_custom_call.1} parent=1 // pred_region
      _
    $region5: #{tpu_custom_call.1} parent=1 // pred_fallthru
      _
    // Predicated region
    $region6: #{tpu_custom_call.1} parent=1 // pred_check
      _
    $region7: #{tpu_custom_call.1} parent=1 // pred_check_branch
      %12 = sbr.rel (0) target = $region9
    $region8: #{tpu_custom_call.1} parent=1 // pred_region
      _
    $region9: #{tpu_custom_call.1} parent=1 // pred_fallthru
      _
    // Predicated region
    $region10: #{tpu_custom_call.1} parent=1 // pred_check
      _
    $region11: #{tpu_custom_call.1} parent=1 // pred_check_branch
      %14 = sbr.rel (0) target = $region13
    $region12: #{tpu_custom_call.1} parent=1 // pred_region
      _
    $region13: #{tpu_custom_call.1} parent=1 // pred_fallthru
      _
    %v15 = vld [vmem:[%s0] sm:$0xff]
    %v16 = vld [vmem:[%s0 + $0x8] sm:$0xff]
    %v17 = vld [vmem:[%s1] sm:$0xff]
    %v18 = vld [vmem:[%s1 + $0x8] sm:$0xff]
    %v19 = vld [vmem:[%s1 + $0x10] sm:$0xff]
    %v20 = vld [vmem:[%s1 + $0x18] sm:$0xff]
    %vm21 = vcmask 261120
    %v23 = vsel %vm21, %v15, 0
    %v26 = vsel %vm21, %v16, 0
    %28 = vmatprep.subr.mxu0 0.0
    %29 = vmatpush1.msra.mxu0 %v17
    %30 = vmatprep.subr.mxu0 0.0
    %31 = vmatpush1.msra.mxu0 %v18
    %32 = vmatprep.subr.mxu0 0.0
    %33 = vmatpush1.msra.mxu0 %v19
    %34 = vmatprep.subr.mxu0 0.0
    %35 = vmatpush1.msra.mxu0 %v20
    %36 = vmatprep.subr.mxu0 0.0
    %37 = vmatpush1.msra.mxu0 0.0
    %38 = vmatprep.subr.mxu0 0.0
    %39 = vmatpush1.msra.mxu0 0.0
    %40 = vmatprep.subr.mxu0 0.0
    %41 = vmatpush1.msra.mxu0 0.0
    %42 = vmatprep.subr.mxu0 0.0
    %43 = vmatpush1.msra.mxu0 0.0
    %44 = vmatprep.subr.mxu0 0.0
    %45 = vmatpush1.msra.mxu0 0.0
    %46 = vmatprep.subr.mxu0 0.0
    %47 = vmatpush1.msra.mxu0 0.0
    %48 = vmatprep.subr.mxu0 0.0
    %49 = vmatpush1.msra.mxu0 0.0
    %50 = vmatprep.subr.mxu0 0.0
    %51 = vmatpush1.msra.mxu0 0.0
    %52 = vmatprep.subr.mxu0 0.0
    %53 = vmatpush1.msra.mxu0 0.0
    %54 = vmatprep.subr.mxu0 0.0
    %55 = vmatpush1.msra.mxu0 0.0
    %56 = vmatprep.subr.mxu0 0.0
    %57 = vmatpush1.msra.mxu0 0.0
    %58 = vmatprep.subr.mxu0 0.0
    %59 = vmatpush1.msra.mxu0 0.0
    %60 = vmatprep.subr.mxu0 0.0
    %61 = vmatpush1.msra.mxu0 0.0
    %62 = vmatprep.subr.mxu0 0.0
    %63 = vmatpush1.msra.mxu0 0.0
    %64 = vmatprep.subr.mxu0 0.0
    %65 = vmatpush1.msra.mxu0 0.0
    %66 = vmatprep.subr.mxu0 0.0
    %67 = vmatpush1.msra.mxu0 0.0
    %68 = vmatprep.subr.mxu0 0.0
    %69 = vmatpush1.msra.mxu0 0.0
    %70 = vmatprep.subr.mxu0 0.0
    %71 = vmatpush1.msra.mxu0 0.0
    %72 = vmatprep.subr.mxu0 0.0
    %73 = vmatpush1.msra.mxu0 0.0
    %74 = vmatprep.subr.mxu0 0.0
    %75 = vmatpush1.msra.mxu0 0.0
    %76 = vmatprep.subr.mxu0 0.0
    %77 = vmatpush1.msra.mxu0 0.0
    %78 = vmatprep.subr.mxu0 0.0
    %79 = vmatpush1.msra.mxu0 0.0
    %80 = vmatprep.subr.mxu0 0.0
    %81 = vmatpush1.msra.mxu0 0.0
    %82 = vmatprep.subr.mxu0 0.0
    %83 = vmatpush1.msra.mxu0 0.0
    %84 = vmatprep.subr.mxu0 0.0
    %85 = vmatpush1.msra.mxu0 0.0
    %86 = vmatprep.subr.mxu0 0.0
    %87 = vmatpush1.msra.mxu0 0.0
    %88 = vmatprep.subr.mxu0 0.0
    %89 = vmatpush1.msra.mxu0 0.0
    %90 = vmatprep.subr.mxu0 0.0
    %91 = vmatpush1.msra.mxu0 0.0
    %92 = vmatprep.mubr.f32.mxu0 0.0
    %93 = vmatmul.mubr.f32.gmra.mrb[0].mxu0 %v23
    %v94 = vpop.f32.mrb[0].mxu0
    %v95 = vadd.f32 0.0, %v94
    %v96 = vpop.f32.mrb[0].mxu0
    %97 = vmatprep.mubr.f32.mxu0 0.0
    %98 = vmatmul.mubr.f32.gmra.mrb[0].mxu0 %v26
    %v99 = vpop.f32.mrb[0].mxu0
    %v100 = vadd.f32 0.0, %v99
    %v101 = vpop.f32.mrb[0].mxu0
    %102 = vdwg.mxu0
    %v103 = vmul.f32 %v95, 0.5
    %v104 = vmul.f32 %v100, 0.5
    %v105 = vmul.f32 %v95, 0.70710677
    %v106 = vmul.f32 %v100, 0.70710677
    %v107 = verf.f32.pop %v105
    %v108 = verf.f32.pop %v106
    %v109 = vadd.f32 %v107, 1.0
    %v110 = vadd.f32 %v108, 1.0
    %v111 = vmul.f32 %v103, %v109
    %v112 = vmul.f32 %v104, %v110
    %v113 = vld [vmem:[%s2] sm:$0xff]
    %v114 = vld [vmem:[%s2 + $0x8] sm:$0xff]
    %v115 = vld [vmem:[%s2 + $0x10] sm:$0xff]
    %v116 = vld [vmem:[%s2 + $0x18] sm:$0xff]
    %v117 = vld [vmem:[%s2 + $0x20] sm:$0xff]
    %v118 = vld [vmem:[%s2 + $0x28] sm:$0xff]
    %v119 = vld [vmem:[%s2 + $0x30] sm:$0xff]
    %v120 = vld [vmem:[%s2 + $0x38] sm:$0xff]
    %vm121 = vcmask 523264
    %v123 = vsel %vm121, %v111, 0
    %v126 = vsel %vm121, %v112, 0
    %128 = vmatprep.subr.mxu0 0.0
    %129 = vmatpush1.msra.mxu0 %v113
    %130 = vmatprep.subr.mxu0 0.0
    %131 = vmatpush1.msra.mxu0 %v114
    %132 = vmatprep.subr.mxu0 0.0
    %133 = vmatpush1.msra.mxu0 %v115
    %134 = vmatprep.subr.mxu0 0.0
    %135 = vmatpush1.msra.mxu0 %v116
    %136 = vmatprep.subr.mxu0 0.0
    %137 = vmatpush1.msra.mxu0 %v117
    %138 = vmatprep.subr.mxu0 0.0
    %139 = vmatpush1.msra.mxu0 %v118
    %140 = vmatprep.subr.mxu0 0.0
    %141 = vmatpush1.msra.mxu0 %v119
    %142 = vmatprep.subr.mxu0 0.0
    %143 = vmatpush1.msra.mxu0 %v120
    %144 = vmatprep.subr.mxu0 0.0
    %145 = vmatpush1.msra.mxu0 0.0
    %146 = vmatprep.subr.mxu0 0.0
    %147 = vmatpush1.msra.mxu0 0.0
    %148 = vmatprep.subr.mxu0 0.0
    %149 = vmatpush1.msra.mxu0 0.0
    %150 = vmatprep.subr.mxu0 0.0
    %151 = vmatpush1.msra.mxu0 0.0
    %152 = vmatprep.subr.mxu0 0.0
    %153 = vmatpush1.msra.mxu0 0.0
    %154 = vmatprep.subr.mxu0 0.0
    %155 = vmatpush1.msra.mxu0 0.0
    %156 = vmatprep.subr.mxu0 0.0
    %157 = vmatpush1.msra.mxu0 0.0
    %158 = vmatprep.subr.mxu0 0.0
    %159 = vmatpush1.msra.mxu0 0.0
    %160 = vmatprep.subr.mxu0 0.0
    %161 = vmatpush1.msra.mxu0 0.0
    %162 = vmatprep.subr.mxu0 0.0
    %163 = vmatpush1.msra.mxu0 0.0
    %164 = vmatprep.subr.mxu0 0.0
    %165 = vmatpush1.msra.mxu0 0.0
    %166 = vmatprep.subr.mxu0 0.0
    %167 = vmatpush1.msra.mxu0 0.0
    %168 = vmatprep.subr.mxu0 0.0
    %169 = vmatpush1.msra.mxu0 0.0
    %170 = vmatprep.subr.mxu0 0.0
    %171 = vmatpush1.msra.mxu0 0.0
    %172 = vmatprep.subr.mxu0 0.0
    %173 = vmatpush1.msra.mxu0 0.0
    %174 = vmatprep.subr.mxu0 0.0
    %175 = vmatpush1.msra.mxu0 0.0
    %176 = vmatprep.subr.mxu0 0.0
    %177 = vmatpush1.msra.mxu0 0.0
    %178 = vmatprep.subr.mxu0 0.0
    %179 = vmatpush1.msra.mxu0 0.0
    %180 = vmatprep.subr.mxu0 0.0
    %181 = vmatpush1.msra.mxu0 0.0
    %182 = vmatprep.subr.mxu0 0.0
    %183 = vmatpush1.msra.mxu0 0.0
    %184 = vmatprep.subr.mxu0 0.0
    %185 = vmatpush1.msra.mxu0 0.0
    %186 = vmatprep.subr.mxu0 0.0
    %187 = vmatpush1.msra.mxu0 0.0
    %188 = vmatprep.subr.mxu0 0.0
    %189 = vmatpush1.msra.mxu0 0.0
    %190 = vmatprep.subr.mxu0 0.0
    %191 = vmatpush1.msra.mxu0 0.0
    %192 = vmatprep.mubr.f32.mxu0 0.0
    %193 = vmatmul.mubr.f32.gmra.mrb[0].mxu0 %v123
    %v194 = vpop.f32.mrb[0].mxu0
    %v195 = vadd.f32 0.0, %v194
    %v196 = vpop.f32.mrb[0].mxu0
    %197 = vmatprep.mubr.f32.mxu0 0.0
    %198 = vmatmul.mubr.f32.gmra.mrb[0].mxu0 %v126
    %v199 = vpop.f32.mrb[0].mxu0
    %v200 = vadd.f32 0.0, %v199
    %v201 = vpop.f32.mrb[0].mxu0
    %202 = vdwg.mxu0
    %203 = vst.msk [vmem:[#allocation2] sm:$0xff] %vm21, %v195
    %204 = vst.msk [vmem:[#allocation2 + $0x8] sm:$0xff] %vm21, %v200
    // Predicated region
    $region14: #{tpu_custom_call.1} parent=1 // pred_check
      _
    $region15: #{tpu_custom_call.1} parent=1 // pred_check_branch
      %206 = sbr.rel (0) target = $region17
    $region16: #{tpu_custom_call.1} parent=1 // pred_region
      %s208 = ssub.s32 256, 256
      %209 = vsyncadd [#allocation3], %s208
      %s210 = sshll.u32 [#allocation2], 4
      %s211 = int_to_ptr.vmem [resolvable:$true] %s210
      %216 = dma.vmem_to_hbm [thread:$0]  %s211, 256, %s3, [#allocation3], 128, 128, 8
    $region17: #{tpu_custom_call.1} parent=1 // pred_fallthru
      _
    // Predicated region
    $region18: #{tpu_custom_call.1} parent=1 // pred_check
      _
    $region19: #{tpu_custom_call.1} parent=1 // pred_check_branch
      %218 = sbr.rel (0) target = $region21
    $region20: #{tpu_custom_call.1} parent=1 // pred_region
      %219 = dma.done [#allocation3], 256
    $region21: #{tpu_custom_call.1} parent=1 // pred_fallthru
      _
    %220 = vsyncpa [#allocation3], 1

</llo_original>
